<compile_context>
chip_gen: v7x
topology: tpu7x:2x2x1
jax: 0.10.0
libtpu: 0.0.40
codegen_flags: <defaults>
</compile_context>

<pallas_src>
import math

import jax
import jax.numpy as jnp
from jax.experimental import pallas as pl
from jax.experimental.pallas import tpu as pltpu


def _exp_kernel(x_ref, o_ref):
    # Elementwise exp on one VMEM tile (EUP transcendental; kernel is HBM-bound).
    o_ref[...] = jnp.exp(x_ref[...])


_MAX_LANE_COLS = 8192          # upper bound on the lane (last) axis of the slab
_TARGET_TILE_BYTES = 4 << 20   # ~4 MiB per array tile (roofline plateau)


def _choose_slab(shape):
    """Pick a lane-dense (rows, cols) factorization of the element count.

    Prefers cols = largest multiple of 128 (<= _MAX_LANE_COLS) dividing the
    element count that still leaves >= 8 rows (full sublane use); otherwise the
    largest dividing multiple of 128; otherwise falls back to collapsing the
    original trailing dims.
    """
    total = int(math.prod(shape)) if len(shape) else 1
    if total == 0:
        return 0, 1

    best = 0
    best_full_rows = 0
    c = (min(_MAX_LANE_COLS, total) // 128) * 128
    while c >= 128:
        if total % c == 0:
            if best == 0:
                best = c                 # largest multiple of 128 dividing total
            if total // c >= 8:
                best_full_rows = c       # largest such c with >= 8 rows
                break
        c -= 128
    c = best_full_rows or best
    if c:
        return total // c, c

    # Fallback: no multiple of 128 divides the element count.
    if len(shape) >= 2:
        rows_a, cols_a = math.prod(shape[:-1]), shape[-1]
        rows_b, cols_b = math.prod(shape[:-2]), shape[-2] * shape[-1]
        return (rows_b, cols_b) if cols_a < 128 else (rows_a, cols_a)
    return 1, total


def _pick_tile(dim, max_tile, align):
    """Full extent if it fits; else the largest aligned *divisor* <= max_tile
    (avoids ragged edge tiles / masked stores); else the largest aligned tile."""
    if dim <= max_tile:
        return dim
    cap = max(align, (max_tile // align) * align)
    t = cap
    while t >= align:
        if dim % t == 0:
            return t
        t -= align
    return cap


def exp_nn_forward(x, *, donate=False):
    """Elementwise exp of x (any shape), computed with a tiled Pallas kernel.

    Set donate=True in production when x is dead after the call: aliases the
    output onto the input buffer and halves peak HBM footprint.
    """
    orig_shape = x.shape
    rows, cols = _choose_slab(orig_shape)
    if rows == 0 or cols == 0:
        return jnp.exp(x)  # degenerate empty array

    x2d = x.reshape(rows, cols)

    itemsize = jnp.dtype(x.dtype).itemsize
    scale = max(1, 4 // itemsize)        # 1 for f32, 2 for bf16/f16, 4 for int8/fp8
    sublane = 8 * scale                  # sublane packing alignment per dtype

    # Lane-axis tile first: long contiguous DMA rows, byte-constant across dtypes.
    tc = _pick_tile(cols, 4096 * scale, 128)
    # Row-axis tile fills the rest of the ~4 MiB per-tile budget.
    tr_budget = max(sublane, _TARGET_TILE_BYTES // max(1, tc * itemsize))
    tr = _pick_tile(rows, tr_budget, sublane)

    # v7x has 2 TensorCores: don't let a mid-sized input collapse to a single
    # tile, or one core idles.  No-op on v5e/v6e (single TC) and on tiny inputs.
    if pl.cdiv(rows, tr) * pl.cdiv(cols, tc) == 1 and rows * cols * itemsize >= (1 << 20):
        if rows > sublane:
            tr = max(sublane, ((rows + 1) // 2 // sublane) * sublane)
        elif cols > 128:
            tc = max(128, ((cols + 1) // 2 // 128) * 128)

    grid = (pl.cdiv(rows, tr), pl.cdiv(cols, tc))

    out2d = pl.pallas_call(
        _exp_kernel,
        out_shape=jax.ShapeDtypeStruct((rows, cols), x.dtype),
        grid_spec=pltpu.PrefetchScalarGridSpec(
            num_scalar_prefetch=0,
            grid=grid,
            in_specs=[pl.BlockSpec((tr, tc), lambda i, j: (i, j))],
            out_specs=pl.BlockSpec((tr, tc), lambda i, j: (i, j)),
        ),
        compiler_params=pltpu.CompilerParams(
            # No reduction axis: all tiles independent -> megacore sharding.
            dimension_semantics=("parallel", "parallel"),
            # 2 arrays x 2 buffers x <=4 MiB tile = <=16 MiB pipelined VMEM;
            # raise above v5e's 16 MiB scoped default, still well under v7x's
            # 64 MiB physical per-TC VMEM.
            vmem_limit_bytes=32 << 20,
        ),
        input_output_aliases=({0: 0} if donate else {}),
    )(x2d)

    return out2d.reshape(orig_shape)


if __name__ == "__main__":
    key = jax.random.PRNGKey(0)

    # Primary check: NCHW input as implied by the module.
    N, C, H, W = 2, 4, 16, 16
    x = jax.random.normal(key, (N, C, H, W), dtype=jnp.float32)

    out = exp_nn_forward(x)
    out = jax.block_until_ready(out)

    ref = jnp.exp(x)
    assert out.shape == x.shape
    assert jnp.allclose(out, ref, rtol=1e-6, atol=1e-6), "mismatch vs reference"

    # Secondary check: an awkward shape whose element count has no factor of
    # 128 (exercises the fallback slab path / full-extent blocks).
    y = jax.random.normal(jax.random.PRNGKey(1), (3, 5, 7), dtype=jnp.float32)
    out_y = jax.block_until_ready(exp_nn_forward(y))
    assert jnp.allclose(out_y, jnp.exp(y), rtol=1e-6, atol=1e-6), "mismatch (fallback path)"

    print("KERNEL_OK")
</pallas_src>

<mosaic_0001>
module attributes {stable_mosaic.version = 11 : i64} {
  func.func @_exp_kernel(%arg0: i32, %arg1: i32, %arg2: memref<8x256xf32, #tpu.memory_space<vmem>>, %arg3: memref<8x256xf32, #tpu.memory_space<vmem>>) attributes {dimension_semantics = [#tpu.dimension_semantics<parallel>, #tpu.dimension_semantics<parallel>], iteration_bounds = array<i64: 1, 1>, scalar_prefetch = 0 : i64, scratch_operands = 0 : i64, tpu.core_type = #tpu.core_type<tc>, window_params = [{transform_indices = @transform_0, window_bounds = array<i64: 8, 256>}, {transform_indices = @transform_1, window_bounds = array<i64: 8, 256>}]} {
    %c0 = arith.constant 0 : index
    %c0_0 = arith.constant 0 : index
    %0 = vector.load %arg2[%c0, %c0_0] : memref<8x256xf32, #tpu.memory_space<vmem>>, vector<8x256xf32>
    %1 = math.exp %0 : vector<8x256xf32>
    %c0_1 = arith.constant 0 : index
    %c0_2 = arith.constant 0 : index
    %2 = vector.load %arg3[%c0_1, %c0_2] : memref<8x256xf32, #tpu.memory_space<vmem>>, vector<8x256xf32>
    tpu.vector_store %arg3[%c0_1, %c0_2], %1 {strides = array<i32>} : memref<8x256xf32, #tpu.memory_space<vmem>>, vector<8x256xf32>,
    return
  }
  func.func @transform_0(%arg0: i32, %arg1: i32) -> (i32, i32) {
    %c0_i32 = arith.constant 0 : i32
    return %arg0, %arg1 : i32, i32
  }
  func.func @transform_1(%arg0: i32, %arg1: i32) -> (i32, i32) {
    %c0_i32 = arith.constant 0 : i32
    return %arg0, %arg1 : i32, i32
  }
}

</mosaic_0001>

<llo_original>
// kernel: tpu_custom_call.1
$region0: #{tpu_custom_call.1}
  #allocation0 [shape = 'u32[]', space=smem, size = 0x4, offset = 0x4, fixed_abs, tag = 'smem constant byte address 0x4 - core index']
  #allocation1 [shape = 'u32[144,128]{1,0:T(1,128)}', space=vmem, size = 0x12000, scoped, tag = 'internal scratch']
  %s0 = inlined_call_operand.hbm [shape: f32[8,256], index: 0, kind: input, shape index: {}]
  %s1 = inlined_call_operand.hbm [shape: f32[8,256], index: 1, kind: output, shape index: {}]
  %s2 = sld [smem:[#allocation0]]
  $region18: #{tpu_custom_call.1} parent=0
    _
  %s4 = ssub.s32 1, %s2
  %s5 = scalar_select 0, %s4, %s2
  $region1: #{tpu_custom_call.1} parent=0
    #allocation2 [shape = 'u8[8192]{0}', space=vmem, size = 0x2000, scoped, tag = 'input window, operand 0, single buffered']
    #allocation3 [shape = 's32[1]{0}', space=sflag, size = 0x4, scoped, tag = 'scoped memory for tpu_custom_call.1']
    #allocation4 [shape = 's32[1]{0}', space=sflag, size = 0x4, scoped, tag = 'scoped memory for tpu_custom_call.1']
    #allocation5 [shape = 'u8[8192]{0}', space=vmem, size = 0x2000, scoped, tag = 'output window, operand 0, single buffered']
    %6 = vsyncpa [#allocation3], 0
    %7 = vsyncpa [#allocation4], 0
    // Predicated region
    $region2: #{tpu_custom_call.1} parent=1 // pred_check
      _
    $region3: #{tpu_custom_call.1} parent=1 // pred_check_branch
      %9 = sbr.rel (0) target = $region5
    $region4: #{tpu_custom_call.1} parent=1 // pred_region
      %s11 = ssub.s32 256, 256
      %12 = vsyncadd [#allocation3], %s11
      %s14 = sshll.u32 [#allocation2], 4
      %s15 = int_to_ptr.vmem [resolvable:$true] %s14
      %17 = dma.hbm_to_vmem [thread:$0]  %s0, 256, %s15, [#allocation3]
    $region5: #{tpu_custom_call.1} parent=1 // pred_fallthru
      _
    // Predicated region
    $region6: #{tpu_custom_call.1} parent=1 // pred_check
      _
    $region7: #{tpu_custom_call.1} parent=1 // pred_check_branch
      %19 = sbr.rel (0) target = $region9
    $region8: #{tpu_custom_call.1} parent=1 // pred_region
      %20 = dma.done [#allocation3], 256
    $region9: #{tpu_custom_call.1} parent=1 // pred_fallthru
      _
    %v21 = vld [vmem:[#allocation2] sm:$0xff]
    %v22 = vld [vmem:[#allocation2 + $0x8] sm:$0xff]
    %v23 = vmul.f32 %v21, 1.442695
    %v24 = vpow.pop %v23
    %v25 = vmul.f32 %v22, 1.442695
    %v26 = vpow.pop %v25
    %27 = vst [vmem:[#allocation5] sm:$0xff] %v24
    %28 = vst [vmem:[#allocation5 + $0x8] sm:$0xff] %v26
    // Predicated region
    $region10: #{tpu_custom_call.1} parent=1 // pred_check
      _
    $region11: #{tpu_custom_call.1} parent=1 // pred_check_branch
      %30 = sbr.rel (0) target = $region13
    $region12: #{tpu_custom_call.1} parent=1 // pred_region
      %s32 = ssub.s32 256, 256
      %33 = vsyncadd [#allocation4], %s32
      %s35 = sshll.u32 [#allocation5], 4
      %s36 = int_to_ptr.vmem [resolvable:$true] %s35
      %38 = dma.vmem_to_hbm [thread:$0]  %s36, 256, %s1, [#allocation4]
    $region13: #{tpu_custom_call.1} parent=1 // pred_fallthru
      _
    // Predicated region
    $region14: #{tpu_custom_call.1} parent=1 // pred_check
      _
    $region15: #{tpu_custom_call.1} parent=1 // pred_check_branch
      %40 = sbr.rel (0) target = $region17
    $region16: #{tpu_custom_call.1} parent=1 // pred_region
      %41 = dma.done [#allocation4], 256
    $region17: #{tpu_custom_call.1} parent=1 // pred_fallthru
      _
    %42 = vsyncpa [#allocation3], 1
    %43 = vsyncpa [#allocation4], 1

</llo_original>
